<compile_context>
chip_gen: v6e
topology: v6e:2x2x1
jax: 0.10.0
libtpu: 0.0.40
codegen_flags: <defaults>
</compile_context>

<pallas_src>
import functools

import jax
import jax.numpy as jnp
from jax import lax
from jax.experimental import pallas as pl
from jax.experimental.pallas import tpu as pltpu

_LANES = 128
_MAX_BLOCK_ROWS = 8192       # 8192*128*4B = 4 MiB per f32 input block.
_MIN_PALLAS_ELEMS = 1 << 16  # below this, fused XLA beats a kernel launch.


def _ab_kernel(s_ref, t_ref, out_ref, acc_ref, *, margin, block_rows,
               inner_steps, valid_rows, needs_mask):
    i = pl.program_id(1)

    @pl.when(i == 0)
    def _():
        acc_ref[...] = jnp.zeros_like(acc_ref)

    s = s_ref[...].astype(jnp.float32)
    t = t_ref[...].astype(jnp.float32)

    d_pos = s + margin
    d_neg = s - margin
    m_pos = jnp.logical_and(s > -margin, t <= 0.0)
    m_neg = jnp.logical_and(s <= margin, t > 0.0)
    contrib = (jnp.where(m_pos, d_pos * d_pos, 0.0)
               + jnp.where(m_neg, d_neg * d_neg, 0.0))

    if needs_mask:
        # Logical (unclamped) block index of this step.  Rows >= valid_rows are
        # either undefined pipeline padding of the last partial block or
        # duplicated data from clamped overflow steps -> zero them.
        b = pl.program_id(0) * inner_steps + i
        row_ids = b * block_rows + lax.broadcasted_iota(
            jnp.int32, contrib.shape, 0)
        contrib = jnp.where(row_ids < valid_rows, contrib, 0.0)

    # Vreg-wise (pure VALU) accumulation into the persistent (8,128) scratch;
    # the cross-sublane/lane collapse happens once, outside the kernel.
    acc_ref[...] += contrib.reshape(-1, 8, _LANES).sum(axis=0)

    @pl.when(i == pl.num_programs(1) - 1)
    def _():
        out_ref[...] = acc_ref[...].reshape(out_ref.shape)


def ab_loss_pallas(fm_s, fm_t, *, margin, max_block_rows=_MAX_BLOCK_ROWS):
    assert fm_s.shape == fm_t.shape, (fm_s.shape, fm_t.shape)
    margin = float(margin)
    total = int(fm_s.size)
    assert total > 0, "AB loss over an empty tensor is undefined"

    isz_s = jnp.dtype(fm_s.dtype).itemsize
    isz_t = jnp.dtype(fm_t.dtype).itemsize
    sub = max(8, 32 // isz_s, 32 // isz_t)   # sublane tile multiple

    rows = pl.cdiv(total, _LANES)
    rows = pl.cdiv(rows, sub) * sub          # sublane-aligned row count
    padded_total = rows * _LANES

    s = fm_s.reshape(-1)
    t = fm_t.reshape(-1)
    if padded_total != total:
        # Rare ragged tail (< sub*128 elements).  Pad values are chosen so the
        # contribution is exactly zero even after low-precision rounding:
        #   s_pad < -|margin|  -> first mask false;  t_pad = 0 -> second false.
        pad = padded_total - total
        s_pad = -(2.0 * abs(margin) + 1.0)
        s = jnp.concatenate([s, jnp.full((pad,), s_pad, dtype=s.dtype)])
        t = jnp.concatenate([t, jnp.zeros((pad,), dtype=t.dtype)])
    s2 = s.reshape(rows, _LANES)             # free reshape when no pad
    t2 = t.reshape(rows, _LANES)

    block_rows = max(sub, (min(int(max_block_rows), rows) // sub) * sub)
    num_blocks = pl.cdiv(rows, block_rows)
    num_slices = 2 if num_blocks >= 2 else 1   # one slice per v7x TensorCore
    inner_steps = pl.cdiv(num_blocks, num_slices)
    needs_mask = (num_slices * inner_steps * block_rows != rows)

    def in_index(p, i):
        # Clamp overflow steps (num_blocks % num_slices != 0) onto the last
        # real block; their contribution is zeroed by the in-kernel mask.
        return (jnp.minimum(p * inner_steps + i, num_blocks - 1), 0)

    kern = functools.partial(
        _ab_kernel, margin=margin, block_rows=block_rows,
        inner_steps=inner_steps, valid_rows=rows, needs_mask=needs_mask)

    # 2 inputs x 2 pipeline buffers x block bytes, plus generous headroom.
    block_bytes = 2 * block_rows * _LANES * (isz_s + isz_t)
    vmem_limit = int(block_bytes + (16 << 20))

    in_spec = pl.BlockSpec((block_rows, _LANES), in_index)

    partials = pl.pallas_call(
        kern,
        out_shape=jax.ShapeDtypeStruct((num_slices, 8, _LANES), jnp.float32),
        grid_spec=pltpu.PrefetchScalarGridSpec(
            num_scalar_prefetch=0,
            grid=(num_slices, inner_steps),
            in_specs=[in_spec, in_spec],
            out_specs=pl.BlockSpec((1, 8, _LANES), lambda p, i: (p, 0, 0)),
            scratch_shapes=[pltpu.VMEM((8, _LANES), jnp.float32)],
        ),
        compiler_params=pltpu.CompilerParams(
            dimension_semantics=("parallel", "arbitrary"),
            vmem_limit_bytes=vmem_limit,
        ),
        cost_estimate=pl.CostEstimate(
            flops=14 * total,
            transcendentals=0,
            bytes_accessed=total * (isz_s + isz_t)
            + num_slices * 8 * _LANES * 4,
        ),
    )(s2, t2)

    return jnp.sum(partials) * (1.0 / float(total))


def _ab_loss_reference(fm_s, fm_t, margin):
    s = fm_s.astype(jnp.float32)
    t = fm_t.astype(jnp.float32)
    m1 = jnp.logical_and(s > -margin, t <= 0).astype(jnp.float32)
    m2 = jnp.logical_and(s <= margin, t > 0).astype(jnp.float32)
    loss = (s + margin) ** 2 * m1 + (s - margin) ** 2 * m2
    return jnp.mean(loss)


def ab_loss(fm_s, fm_t, *, margin, max_block_rows=_MAX_BLOCK_ROWS):
    """AB loss; tiny inputs use a fused-XLA fast path, large ones the kernel."""
    if int(fm_s.size) < _MIN_PALLAS_ELEMS:
        return _ab_loss_reference(fm_s, fm_t, margin)
    return ab_loss_pallas(fm_s, fm_t, margin=margin,
                          max_block_rows=max_block_rows)


class AB:
    """JAX/Pallas port of the PyTorch AB (activation boundaries) loss."""

    def __init__(self, margin):
        self.margin = margin

    def __call__(self, fm_s, fm_t):
        return ab_loss(fm_s, fm_t, margin=self.margin)


if __name__ == "__main__":
    key = jax.random.PRNGKey(0)
    k1, k2, k3, k4, k5, k6 = jax.random.split(key, 6)
    margin = 1.0
    ab = AB(margin)

    # Case 1: canonical small feature map (2,4,16,16); force the kernel path.
    fm_s = jax.random.normal(k1, (2, 4, 16, 16), dtype=jnp.float32)
    fm_t = jax.random.normal(k2, (2, 4, 16, 16), dtype=jnp.float32)
    out1 = jax.block_until_ready(ab_loss_pallas(fm_s, fm_t, margin=margin))
    ref1 = _ab_loss_reference(fm_s, fm_t, margin)
    assert jnp.allclose(out1, ref1, atol=1e-5, rtol=1e-5), (out1, ref1)

    # Module-style call (small inputs take the fused-XLA fast path).
    out1b = jax.block_until_ready(ab(fm_s, fm_t))
    assert jnp.allclose(out1b, ref1, atol=1e-5, rtol=1e-5), (out1b, ref1)

    # Case 2: unaligned total size (exercises the zero-contribution tail pad).
    fs2 = jax.random.normal(k3, (2, 3, 7, 5), dtype=jnp.float32)
    ft2 = jax.random.normal(k4, (2, 3, 7, 5), dtype=jnp.float32)
    out2 = jax.block_until_ready(ab_loss_pallas(fs2, ft2, margin=margin))
    ref2 = _ab_loss_reference(fs2, ft2, margin)
    assert jnp.allclose(out2, ref2, atol=1e-5, rtol=1e-5), (out2, ref2)

    # Case 3: multi-block grid with the 2-way parallel split, a ragged last
    # block and a clamped overflow step (small max_block_rows keeps the test
    # tiny while exercising the exact code paths used for large inputs).
    fs3 = jax.random.normal(k5, (2, 8, 33, 32), dtype=jnp.float32)
    ft3 = jax.random.normal(k6, (2, 8, 33, 32), dtype=jnp.float32)
    out3 = jax.block_until_ready(
        ab_loss_pallas(fs3, ft3, margin=margin, max_block_rows=64))
    ref3 = _ab_loss_reference(fs3, ft3, margin)
    assert jnp.allclose(out3, ref3, atol=1e-5, rtol=1e-5), (out3, ref3)

    print("KERNEL_OK")
</pallas_src>

<mosaic_0001>
module attributes {stable_mosaic.version = 11 : i64} {
  func.func @_ab_kernel(%arg0: i32, %arg1: i32, %arg2: memref<16x128xf32, #tpu.memory_space<vmem>>, %arg3: memref<16x128xf32, #tpu.memory_space<vmem>>, %arg4: memref<1x8x128xf32, #tpu.memory_space<vmem>>, %arg5: memref<8x128xf32, #tpu.memory_space<vmem>>) attributes {dimension_semantics = [#tpu.dimension_semantics<parallel>, #tpu.dimension_semantics<arbitrary>], iteration_bounds = array<i64: 1, 1>, scalar_prefetch = 0 : i64, scratch_operands = 1 : i64, tpu.core_type = #tpu.core_type<tc>, window_params = [{transform_indices = @transform_0, window_bounds = array<i64: 16, 128>}, {transform_indices = @transform_1, window_bounds = array<i64: 16, 128>}, {transform_indices = @transform_2, window_bounds = array<i64: 1, 8, 128>}]} {
    %c0_i32 = arith.constant 0 : i32
    %0 = arith.cmpi eq, %arg1, %c0_i32 : i32
    %1 = arith.extui %0 : i1 to i32
    %c0_i32_0 = arith.constant 0 : i32
    %2 = arith.cmpi ne, %1, %c0_i32_0 : i32
    scf.if %2 {
      %cst_18 = arith.constant 0.000000e+00 : f32
      %34 = vector.broadcast %cst_18 : f32 to vector<8x128xf32>
      %c0_19 = arith.constant 0 : index
      %c0_20 = arith.constant 0 : index
      %35 = vector.load %arg5[%c0_19, %c0_20] : memref<8x128xf32, #tpu.memory_space<vmem>>, vector<8x128xf32>
      tpu.vector_store %arg5[%c0_19, %c0_20], %34 {strides = array<i32>} : memref<8x128xf32, #tpu.memory_space<vmem>>, vector<8x128xf32>,
    } else {
    }
    %c0 = arith.constant 0 : index
    %c0_1 = arith.constant 0 : index
    %3 = vector.load %arg2[%c0, %c0_1] : memref<16x128xf32, #tpu.memory_space<vmem>>, vector<16x128xf32>
    %c0_2 = arith.constant 0 : index
    %c0_3 = arith.constant 0 : index
    %4 = vector.load %arg3[%c0_2, %c0_3] : memref<16x128xf32, #tpu.memory_space<vmem>>, vector<16x128xf32>
    %cst = arith.constant 1.000000e+00 : f32
    %5 = vector.broadcast %cst : f32 to vector<16x128xf32>
    %6 = arith.addf %3, %5 : vector<16x128xf32>
    %cst_4 = arith.constant 1.000000e+00 : f32
    %7 = vector.broadcast %cst_4 : f32 to vector<16x128xf32>
    %8 = arith.subf %3, %7 : vector<16x128xf32>
    %cst_5 = arith.constant -1.000000e+00 : f32
    %9 = vector.broadcast %cst_5 : f32 to vector<16x128xf32>
    %10 = arith.cmpf ogt, %3, %9 : vector<16x128xf32>
    %cst_6 = arith.constant 0.000000e+00 : f32
    %11 = vector.broadcast %cst_6 : f32 to vector<16x128xf32>
    %12 = arith.cmpf ole, %4, %11 : vector<16x128xf32>
    %13 = arith.andi %10, %12 : vector<16x128xi1>
    %cst_7 = arith.constant 1.000000e+00 : f32
    %14 = vector.broadcast %cst_7 : f32 to vector<16x128xf32>
    %15 = arith.cmpf ole, %3, %14 : vector<16x128xf32>
    %cst_8 = arith.constant 0.000000e+00 : f32
    %16 = vector.broadcast %cst_8 : f32 to vector<16x128xf32>
    %17 = arith.cmpf ogt, %4, %16 : vector<16x128xf32>
    %18 = arith.andi %15, %17 : vector<16x128xi1>
    %19 = arith.mulf %6, %6 : vector<16x128xf32>
    %cst_9 = arith.constant 0.000000e+00 : f32
    %20 = vector.broadcast %cst_9 : f32 to vector<16x128xf32>
    %21 = arith.select %13, %19, %20 : vector<16x128xi1>, vector<16x128xf32>
    %22 = arith.mulf %8, %8 : vector<16x128xf32>
    %cst_10 = arith.constant 0.000000e+00 : f32
    %23 = vector.broadcast %cst_10 : f32 to vector<16x128xf32>
    %24 = arith.select %18, %22, %23 : vector<16x128xi1>, vector<16x128xf32>
    %25 = arith.addf %21, %24 : vector<16x128xf32>
    %c0_11 = arith.constant 0 : index
    %c0_12 = arith.constant 0 : index
    %26 = vector.load %arg5[%c0_11, %c0_12] : memref<8x128xf32, #tpu.memory_space<vmem>>, vector<8x128xf32>
    %27 = vector.shape_cast %25 : vector<16x128xf32> to vector<2x8x128xf32>
    %cst_13 = arith.constant dense<0.000000e+00> : vector<8x128xf32>
    %28 = vector.multi_reduction <add>, %27, %cst_13 [0] : vector<2x8x128xf32> to vector<8x128xf32>
    %29 = arith.addf %26, %28 : vector<8x128xf32>
    %c0_14 = arith.constant 0 : index
    %c0_15 = arith.constant 0 : index
    %30 = vector.load %arg5[%c0_14, %c0_15] : memref<8x128xf32, #tpu.memory_space<vmem>>, vector<8x128xf32>
    tpu.vector_store %arg5[%c0_14, %c0_15], %29 {strides = array<i32>} : memref<8x128xf32, #tpu.memory_space<vmem>>, vector<8x128xf32>,
    %c0_i32_16 = arith.constant 0 : i32
    %31 = arith.cmpi eq, %arg1, %c0_i32_16 : i32
    %32 = arith.extui %31 : i1 to i32
    %c0_i32_17 = arith.constant 0 : i32
    %33 = arith.cmpi ne, %32, %c0_i32_17 : i32
    scf.if %33 {
      %c0_18 = arith.constant 0 : index
      %c0_19 = arith.constant 0 : index
      %34 = vector.load %arg5[%c0_18, %c0_19] : memref<8x128xf32, #tpu.memory_space<vmem>>, vector<8x128xf32>
      %35 = vector.shape_cast %34 : vector<8x128xf32> to vector<1x8x128xf32>
      %c0_20 = arith.constant 0 : index
      %c0_21 = arith.constant 0 : index
      %c0_22 = arith.constant 0 : index
      %36 = vector.load %arg4[%c0_20, %c0_21, %c0_22] : memref<1x8x128xf32, #tpu.memory_space<vmem>>, vector<1x8x128xf32>
      tpu.vector_store %arg4[%c0_20, %c0_21, %c0_22], %35 {strides = array<i32>} : memref<1x8x128xf32, #tpu.memory_space<vmem>>, vector<1x8x128xf32>,
    } else {
    }
    return
  }
  func.func @transform_0(%arg0: i32, %arg1: i32) -> (i32, i32) {
    %c1_i32 = arith.constant 1 : i32
    %0 = arith.muli %arg0, %c1_i32 : i32
    %1 = arith.addi %0, %arg1 : i32
    %c0_i32 = arith.constant 0 : i32
    %2 = arith.minsi %1, %c0_i32 : i32
    %c0_i32_0 = arith.constant 0 : i32
    %c0_i32_1 = arith.constant 0 : i32
    return %2, %c0_i32_0 : i32, i32
  }
  func.func @transform_1(%arg0: i32, %arg1: i32) -> (i32, i32) {
    %c1_i32 = arith.constant 1 : i32
    %0 = arith.muli %arg0, %c1_i32 : i32
    %1 = arith.addi %0, %arg1 : i32
    %c0_i32 = arith.constant 0 : i32
    %2 = arith.minsi %1, %c0_i32 : i32
    %c0_i32_0 = arith.constant 0 : i32
    %c0_i32_1 = arith.constant 0 : i32
    return %2, %c0_i32_0 : i32, i32
  }
  func.func @transform_2(%arg0: i32, %arg1: i32) -> (i32, i32, i32) {
    %c0_i32 = arith.constant 0 : i32
    %c0_i32_0 = arith.constant 0 : i32
    %c0_i32_1 = arith.constant 0 : i32
    return %arg0, %c0_i32, %c0_i32_0 : i32, i32, i32
  }
}

</mosaic_0001>

<llo_original>
// kernel: tpu_custom_call.1
$region0: #{tpu_custom_call.1}
  #allocation0 [shape = 'u32[]', space=smem, size = 0x4, offset = 0x4, fixed_abs, tag = 'smem constant byte address 0x4 - core index']
  #allocation1 [shape = 'u32[144,128]{1,0:T(1,128)}', space=vmem, size = 0x12000, scoped, tag = 'internal scratch']
  #allocation2 [shape = 'f32[8,128]{1,0:T(8,128)}', space=vmem, size = 0x1000, scoped, tag = 'scratch operand']
  %s0 = inlined_call_operand.hbm [shape: f32[16,128], index: 0, kind: input, shape index: {}]
  %s1 = inlined_call_operand.hbm [shape: f32[16,128], index: 1, kind: input, shape index: {}]
  %s2 = inlined_call_operand.hbm [shape: f32[1,8,128], index: 2, kind: output, shape index: {}]
  %s3 = sld [smem:[#allocation0]]
  $region34: #{tpu_custom_call.1} parent=0
    _
  %s5 = ssub.s32 1, %s3
  %s6 = scalar_select 0, %s5, %s3
  $region1: #{tpu_custom_call.1} parent=0
    #allocation3 [shape = 'u8[8192]{0}', space=vmem, size = 0x2000, scoped, tag = 'input window, operand 0, single buffered']
    #allocation4 [shape = 's32[1]{0}', space=sflag, size = 0x4, scoped, tag = 'scoped memory for tpu_custom_call.1']
    #allocation5 [shape = 's32[1]{0}', space=sflag, size = 0x4, scoped, tag = 'scoped memory for tpu_custom_call.1']
    #allocation6 [shape = 'u8[8192]{0}', space=vmem, size = 0x2000, scoped, tag = 'input window, operand 1, single buffered']
    #allocation7 [shape = 's32[1]{0}', space=sflag, size = 0x4, scoped, tag = 'scoped memory for tpu_custom_call.1']
    #allocation8 [shape = 'u8[4096]{0}', space=vmem, size = 0x1000, scoped, tag = 'output window, operand 0, single buffered']
    %7 = vsyncpa [#allocation4], 0
    %8 = vsyncpa [#allocation7], 0
    %9 = vsyncpa [#allocation5], 0
    // Predicated region
    $region2: #{tpu_custom_call.1} parent=1 // pred_check
      _
    $region3: #{tpu_custom_call.1} parent=1 // pred_check_branch
      %11 = sbr.rel (0) target = $region5
    $region4: #{tpu_custom_call.1} parent=1 // pred_region
      %s12 = sadd.s32 0, 0
      %p13 = scmp.lt.s32.totalorder %s12, 0
      %s14 = scalar_select %p13, %s12, 0
      %s15 = smul.u32 2, %s14
      %s17 = ssub.s32 256, 256
      %18 = vsyncadd [#allocation4], %s17
      %s19 = smul.addr %s15, 128
      %s20 = scalar_lea.hbm %s0, %s19
      %s21 = sshll.u32 [#allocation3], 4
      %s22 = int_to_ptr.vmem [resolvable:$true] %s21
      %27 = dma.hbm_to_vmem [thread:$0]  %s20, 256, %s22, [#allocation4], 128, 128, 8
    $region5: #{tpu_custom_call.1} parent=1 // pred_fallthru
      _
    // Predicated region
    $region6: #{tpu_custom_call.1} parent=1 // pred_check
      _
    $region7: #{tpu_custom_call.1} parent=1 // pred_check_branch
      %29 = sbr.rel (0) target = $region9
    $region8: #{tpu_custom_call.1} parent=1 // pred_region
      %s30 = sadd.s32 0, 0
      %p31 = scmp.lt.s32.totalorder %s30, 0
      %s32 = scalar_select %p31, %s30, 0
      %s33 = smul.u32 2, %s32
      %s35 = ssub.s32 256, 256
      %36 = vsyncadd [#allocation7], %s35
      %s37 = smul.addr %s33, 128
      %s38 = scalar_lea.hbm %s1, %s37
      %s39 = sshll.u32 [#allocation6], 4
      %s40 = int_to_ptr.vmem [resolvable:$true] %s39
      %45 = dma.hbm_to_vmem [thread:$0]  %s38, 256, %s40, [#allocation7], 128, 128, 8
    $region9: #{tpu_custom_call.1} parent=1 // pred_fallthru
      _
    // Predicated region
    $region10: #{tpu_custom_call.1} parent=1 // pred_check
      _
    $region11: #{tpu_custom_call.1} parent=1 // pred_check_branch
      %47 = sbr.rel (0) target = $region13
    $region12: #{tpu_custom_call.1} parent=1 // pred_region
      %48 = dma.done [#allocation4], 256
    $region13: #{tpu_custom_call.1} parent=1 // pred_fallthru
      _
    // Predicated region
    $region14: #{tpu_custom_call.1} parent=1 // pred_check
      _
    $region15: #{tpu_custom_call.1} parent=1 // pred_check_branch
      %50 = sbr.rel (0) target = $region17
    $region16: #{tpu_custom_call.1} parent=1 // pred_region
      %51 = dma.done [#allocation7], 256
    $region17: #{tpu_custom_call.1} parent=1 // pred_fallthru
      _
    %s52 = sadd.s32 0, 0
    %p53 = scmp.lt.s32.totalorder %s52, 0
    %s54 = scalar_select %p53, %s52, 0
    %s55 = smul.u32 2, %s54
    %s56 = sadd.s32 0, 0
    %p57 = scmp.lt.s32.totalorder %s56, 0
    %s58 = scalar_select %p57, %s56, 0
    %s59 = smul.u32 2, %s58
    %p60 = scmp.eq.s32.totalorder 0, 0
    // Predicated region
    $region18: #{tpu_custom_call.1} parent=1 // pred_check
      %p61 = pneg %p60
    $region19: #{tpu_custom_call.1} parent=1 // pred_check_branch
      %63 = sbr.rel (%p61) target = $region21
    $region20: #{tpu_custom_call.1} parent=1 // pred_region
      %64 = vst [vmem:[#allocation2] sm:$0xff] 0.0
    $region21: #{tpu_custom_call.1} parent=1 // pred_fallthru
      _
    %v65 = vld [vmem:[#allocation3] sm:$0xff]
    %v66 = vld [vmem:[#allocation3 + $0x8] sm:$0xff]
    %v67 = vld [vmem:[#allocation6] sm:$0xff]
    %v68 = vld [vmem:[#allocation6 + $0x8] sm:$0xff]
    %v69 = vadd.f32 %v65, 1.0
    %v70 = vadd.f32 %v66, 1.0
    %v71 = vsub.f32 %v65, 1.0
    %v72 = vsub.f32 %v66, 1.0
    %vm73 = vcmp.gt.f32.partialorder %v65, -1.0
    %vm74 = vcmp.gt.f32.partialorder %v66, -1.0
    %vm75 = vcmp.le.f32.partialorder %v67, 0.0
    %vm76 = vcmp.le.f32.partialorder %v68, 0.0
    %vm77 = vmand %vm73, %vm75
    %vm78 = vmand %vm74, %vm76
    %vm79 = vcmp.le.f32.partialorder %v65, 1.0
    %vm80 = vcmp.le.f32.partialorder %v66, 1.0
    %vm81 = vcmp.gt.f32.partialorder %v67, 0.0
    %vm82 = vcmp.gt.f32.partialorder %v68, 0.0
    %vm83 = vmand %vm79, %vm81
    %vm84 = vmand %vm80, %vm82
    %v85 = vmul.f32 %v69, %v69
    %v86 = vmul.f32 %v70, %v70
    %v87 = vsel %vm77, %v85, 0.0
    %v88 = vsel %vm78, %v86, 0.0
    %v89 = vmul.f32 %v71, %v71
    %v90 = vmul.f32 %v72, %v72
    %v91 = vsel %vm83, %v89, 0.0
    %v92 = vsel %vm84, %v90, 0.0
    %v93 = vadd.f32 %v87, %v91
    %v94 = vadd.f32 %v88, %v92
    %v95 = vld [vmem:[#allocation2] sm:$0xff]
    %v96 = vadd.f32 %v93, %v94
    %v97 = vadd.f32 %v95, %v96
    %98 = vst [vmem:[#allocation2] sm:$0xff] %v97
    // Predicated region
    $region22: #{tpu_custom_call.1} parent=1 // pred_check
      %p99 = pneg %p60
    $region23: #{tpu_custom_call.1} parent=1 // pred_check_branch
      %101 = sbr.rel (%p99) target = $region25
    $region24: #{tpu_custom_call.1} parent=1 // pred_region
      %v102 = vld [vmem:[#allocation2] sm:$0xff]
      %103 = vst [vmem:[#allocation8] sm:$0xff] %v102
    $region25: #{tpu_custom_call.1} parent=1 // pred_fallthru
      _
    // Predicated region
    $region26: #{tpu_custom_call.1} parent=1 // pred_check
      _
    $region27: #{tpu_custom_call.1} parent=1 // pred_check_branch
      %105 = sbr.rel (0) target = $region29
    $region28: #{tpu_custom_call.1} parent=1 // pred_region
      %s107 = ssub.s32 128, 128
      %108 = vsyncadd [#allocation5], %s107
      %s110 = sshll.u32 [#allocation8], 4
      %s111 = int_to_ptr.vmem [resolvable:$true] %s110
      %113 = dma.vmem_to_hbm [thread:$0]  %s111, 128, %s2, [#allocation5]
    $region29: #{tpu_custom_call.1} parent=1 // pred_fallthru
      _
    // Predicated region
    $region30: #{tpu_custom_call.1} parent=1 // pred_check
      _
    $region31: #{tpu_custom_call.1} parent=1 // pred_check_branch
      %115 = sbr.rel (0) target = $region33
    $region32: #{tpu_custom_call.1} parent=1 // pred_region
      %116 = dma.done [#allocation5], 128
    $region33: #{tpu_custom_call.1} parent=1 // pred_fallthru
      _
    %117 = vsyncpa [#allocation4], 1
    %118 = vsyncpa [#allocation7], 1
    %119 = vsyncpa [#allocation5], 1

</llo_original>
